<compile_context>
chip_gen: v7x
topology: tpu7x:2x2x1
jax: 0.10.0
libtpu: 0.0.40
codegen_flags: <defaults>
</compile_context>

<pallas_src>
import functools

import jax
import jax.numpy as jnp
from jax.experimental import pallas as pl
from jax.experimental.pallas import tpu as pltpu

IN_DIM, H1, H2, H3, OUT_DIM = 7, 200, 100, 50, 2
# Padded, hardware-friendly dims (lane = 128, sublane = 8).
K0, N1, N2, N3, N4 = 8, 256, 128, 128, 128
OUT_PAD = 8                       # narrow HBM output: 8 lanes (only 2 are real)
MAX_TB = 4096                     # default large-batch tile (rows), multiple of 16
VMEM_LIMIT_BYTES = 48 * 1024 * 1024


def _net_kernel(x_ref, w1_ref, w2_ref, b2_ref, w3_ref, b3_ref, w4_ref, b4_ref,
                o_ref, *, bf16_act):
    """One batch tile: x(tb,8)bf16 -> fc1..fc4 -> o(tb,8)f32.

    MXU matmuls use bf16 operands with f32 accumulation.  Bias-add + ReLU run in
    `act` precision (bf16 on v6e/v7x, f32 on v5e).  Dropout is eval-mode identity.
    """
    act = jnp.bfloat16 if bf16_act else jnp.float32

    # fc1 (bias folded into w1 via the constant-1 input column) + ReLU; dropout = id.
    h = jnp.dot(x_ref[...], w1_ref[...], preferred_element_type=jnp.float32)
    h = jnp.maximum(h.astype(act), 0.0).astype(jnp.bfloat16)

    # fc2 + bias + ReLU; dropout = id.
    h = jnp.dot(h, w2_ref[...], preferred_element_type=jnp.float32)
    h = jnp.maximum(h.astype(act) + b2_ref[...].astype(act), 0.0).astype(jnp.bfloat16)

    # fc3 + bias + ReLU; dropout = id.
    h = jnp.dot(h, w3_ref[...], preferred_element_type=jnp.float32)
    h = jnp.maximum(h.astype(act) + b3_ref[...].astype(act), 0.0).astype(jnp.bfloat16)

    # fc4 (no activation).  Keep the 128-lane accumulator in VMEM; store only the
    # first OUT_PAD lanes to HBM (narrow, lane-masked store).
    out = jnp.dot(h, w4_ref[...], preferred_element_type=jnp.float32) + b4_ref[...]
    o_ref[...] = out[:, :OUT_PAD].astype(o_ref.dtype)


def _pad_to(a, shape):
    out = jnp.zeros(shape, a.dtype)
    return out.at[tuple(slice(0, s) for s in a.shape)].set(a)


def pack_params(raw):
    """Pad to lane/sublane multiples, cast weights to bf16, fold b1 into w1 row 7."""
    w1 = jnp.zeros((K0, N1), jnp.float32)
    w1 = w1.at[:IN_DIM, :H1].set(raw["w1"])
    w1 = w1.at[IN_DIM, :H1].set(raw["b1"].reshape(-1))   # bias row (input col 7 == 1)
    return dict(
        w1=w1.astype(jnp.bfloat16),
        w2=_pad_to(raw["w2"], (N1, N2)).astype(jnp.bfloat16),
        b2=_pad_to(raw["b2"], (1, N2)),                   # f32, cast in-kernel
        w3=_pad_to(raw["w3"], (N2, N3)).astype(jnp.bfloat16),
        b3=_pad_to(raw["b3"], (1, N3)),
        w4=_pad_to(raw["w4"], (N3, N4)).astype(jnp.bfloat16),
        b4=_pad_to(raw["b4"], (1, N4)),                   # f32, final-layer precision
    )


def use_bf16_activations():
    """bf16 VALU exists on v6e/v7x; keep the f32 elementwise path on v5 and older."""
    try:
        kind = jax.devices()[0].device_kind.lower()
    except Exception:
        return True
    return not any(tag in kind for tag in ("v2", "v3", "v4", "v5"))


def net_forward(x, packed, tb=None, bf16_act=None):
    """x: anything reshapeable to [B, 7]; packed: pack_params(...) output."""
    if bf16_act is None:
        bf16_act = use_bf16_activations()

    x = x.reshape(-1, IN_DIM).astype(jnp.float32)          # x.view(-1, 7)
    B = x.shape[0]

    if tb is None:
        if B >= 2 * MAX_TB:
            tb = MAX_TB                                    # large batches: big tiles
        else:
            # Split into two tiles (megacore sharding on v7x), rounded up to 16 rows
            # (bf16 sublane packing).
            tb = max(16, ((-(-B // 2) + 15) // 16) * 16)
    n_tiles = max(2, -(-B // tb))    # >= 2 grid steps so "parallel" spans both v7x TCs
    B_pad = n_tiles * tb

    # Pad batch to a tile multiple, features 7 -> 8 with column 7 == 1.0 (carries the
    # folded fc1 bias), and cast to bf16 once here (halves the x HBM read).
    xp = (jnp.zeros((B_pad, K0), jnp.bfloat16)
          .at[:B, :IN_DIM].set(x.astype(jnp.bfloat16))
          .at[:, IN_DIM].set(1.0))

    w1 = packed["w1"]
    w2, b2 = packed["w2"], packed["b2"]
    w3, b3 = packed["w3"], packed["b3"]
    w4, b4 = packed["w4"], packed["b4"]

    def resident(shape):
        # Whole-array block with a constant index_map: stays VMEM-resident across
        # all batch tiles.
        return pl.BlockSpec(shape, lambda i: (0, 0))

    flops = 2 * B_pad * (K0 * N1 + N1 * N2 + N2 * N3 + N3 * N4)
    bytes_accessed = (
        int(xp.size) * 2                                   # bf16 x read
        + B_pad * OUT_PAD * 4                              # narrow f32 output write
        + sum(int(p.size) * p.dtype.itemsize for p in (w1, w2, w3, w4, b2, b3, b4)))

    out = pl.pallas_call(
        functools.partial(_net_kernel, bf16_act=bf16_act),
        out_shape=jax.ShapeDtypeStruct((B_pad, OUT_PAD), jnp.float32),
        grid=(n_tiles,),
        in_specs=[
            pl.BlockSpec((tb, K0), lambda i: (i, 0)),      # x: tiled over batch
            resident((K0, N1)),                            # fc1 (bias folded in)
            resident((N1, N2)), resident((1, N2)),         # fc2
            resident((N2, N3)), resident((1, N3)),         # fc3
            resident((N3, N4)), resident((1, N4)),         # fc4
        ],
        out_specs=pl.BlockSpec((tb, OUT_PAD), lambda i: (i, 0)),   # narrow output slab
        compiler_params=pltpu.CompilerParams(
            dimension_semantics=("parallel",),
            vmem_limit_bytes=VMEM_LIMIT_BYTES),
        cost_estimate=pl.CostEstimate(
            flops=flops, transcendentals=0, bytes_accessed=bytes_accessed),
    )(xp, w1, w2, b2, w3, b3, w4, b4)

    return out[:B, :OUT_DIM]


def init_params(key):
    """Deterministic init matching nn.Linear shapes, stored transposed as [in, out]."""
    ks = jax.random.split(key, 8)

    def linear(kw, kb, fan_in, fan_out):
        bound = 1.0 / jnp.sqrt(float(fan_in))
        w = jax.random.uniform(kw, (fan_in, fan_out), jnp.float32, -bound, bound)
        b = jax.random.uniform(kb, (1, fan_out), jnp.float32, -bound, bound)
        return w, b

    w1, b1 = linear(ks[0], ks[1], IN_DIM, H1)
    w2, b2 = linear(ks[2], ks[3], H1, H2)
    w3, b3 = linear(ks[4], ks[5], H2, H3)
    w4, b4 = linear(ks[6], ks[7], H3, OUT_DIM)
    return dict(w1=w1, b1=b1, w2=w2, b2=b2, w3=w3, b3=b3, w4=w4, b4=b4)


def _reference_f32(x, raw):
    x = x.reshape(-1, IN_DIM)
    h = jnp.maximum(x @ raw["w1"] + raw["b1"], 0.0)
    h = jnp.maximum(h @ raw["w2"] + raw["b2"], 0.0)
    h = jnp.maximum(h @ raw["w3"] + raw["b3"], 0.0)
    return h @ raw["w4"] + raw["b4"]


def _reference_kernel_math(x, packed, bf16_act):
    """Mirrors the kernel's math (bf16 MXU operands, f32 acc, act-dtype bias/ReLU)."""
    act = jnp.bfloat16 if bf16_act else jnp.float32
    x = x.reshape(-1, IN_DIM).astype(jnp.float32)
    xp = (jnp.zeros((x.shape[0], K0), jnp.bfloat16)
          .at[:, :IN_DIM].set(x.astype(jnp.bfloat16))
          .at[:, IN_DIM].set(1.0))
    h = jnp.dot(xp, packed["w1"], preferred_element_type=jnp.float32)
    h = jnp.maximum(h.astype(act), 0.0).astype(jnp.bfloat16)
    h = jnp.dot(h, packed["w2"], preferred_element_type=jnp.float32)
    h = jnp.maximum(h.astype(act) + packed["b2"].astype(act), 0.0).astype(jnp.bfloat16)
    h = jnp.dot(h, packed["w3"], preferred_element_type=jnp.float32)
    h = jnp.maximum(h.astype(act) + packed["b3"].astype(act), 0.0).astype(jnp.bfloat16)
    out = jnp.dot(h, packed["w4"], preferred_element_type=jnp.float32) + packed["b4"]
    return out[:, :OUT_DIM]


if __name__ == "__main__":
    key = jax.random.PRNGKey(0)
    kp, kx, kx2 = jax.random.split(key, 3)
    raw = init_params(kp)
    packed = pack_params(raw)
    bf16_act = use_bf16_activations()

    # Small batch, consistent with x.view(-1, 7); default tiling (two-tile path).
    x = jax.random.normal(kx, (8, IN_DIM), jnp.float32)
    out = jax.block_until_ready(net_forward(x, packed, bf16_act=bf16_act))
    assert out.shape == (8, OUT_DIM)
    assert jnp.allclose(out, _reference_kernel_math(x, packed, bf16_act),
                        atol=2e-3, rtol=2e-3), "mismatch vs kernel-exact reference"
    assert jnp.allclose(out, _reference_f32(x, raw), atol=1e-1, rtol=1e-1), \
        "mismatch vs f32 reference"

    # Multi-tile batch grid + ragged-batch padding path (explicit tb=128).
    x2 = jax.random.normal(kx2, (300, IN_DIM), jnp.float32)
    out2 = jax.block_until_ready(net_forward(x2, packed, tb=128, bf16_act=bf16_act))
    assert out2.shape == (300, OUT_DIM)
    assert jnp.allclose(out2, _reference_kernel_math(x2, packed, bf16_act),
                        atol=2e-3, rtol=2e-3), "mismatch vs kernel-exact reference (tiled)"

    print("KERNEL_OK")
</pallas_src>

<mosaic_0001>
module attributes {stable_mosaic.version = 11 : i64} {
  func.func @_net_kernel(%arg0: i32, %arg1: memref<16x8xbf16, #tpu.memory_space<vmem>>, %arg2: memref<8x256xbf16, #tpu.memory_space<vmem>>, %arg3: memref<256x128xbf16, #tpu.memory_space<vmem>>, %arg4: memref<1x128xf32, #tpu.memory_space<vmem>>, %arg5: memref<128x128xbf16, #tpu.memory_space<vmem>>, %arg6: memref<1x128xf32, #tpu.memory_space<vmem>>, %arg7: memref<128x128xbf16, #tpu.memory_space<vmem>>, %arg8: memref<1x128xf32, #tpu.memory_space<vmem>>, %arg9: memref<16x8xf32, #tpu.memory_space<vmem>>) attributes {dimension_semantics = [#tpu.dimension_semantics<parallel>], iteration_bounds = array<i64: 2>, scalar_prefetch = 0 : i64, scratch_operands = 0 : i64, tpu.core_type = #tpu.core_type<tc>, window_params = [{transform_indices = @transform_0, window_bounds = array<i64: 16, 8>}, {pipeline_mode = #tpu.pipeline_mode<synchronous>, transform_indices = @transform_1, window_bounds = array<i64: 8, 256>}, {pipeline_mode = #tpu.pipeline_mode<synchronous>, transform_indices = @transform_2, window_bounds = array<i64: 256, 128>}, {pipeline_mode = #tpu.pipeline_mode<synchronous>, transform_indices = @transform_3, window_bounds = array<i64: 1, 128>}, {pipeline_mode = #tpu.pipeline_mode<synchronous>, transform_indices = @transform_4, window_bounds = array<i64: 128, 128>}, {pipeline_mode = #tpu.pipeline_mode<synchronous>, transform_indices = @transform_5, window_bounds = array<i64: 1, 128>}, {pipeline_mode = #tpu.pipeline_mode<synchronous>, transform_indices = @transform_6, window_bounds = array<i64: 128, 128>}, {pipeline_mode = #tpu.pipeline_mode<synchronous>, transform_indices = @transform_7, window_bounds = array<i64: 1, 128>}, {transform_indices = @transform_8, window_bounds = array<i64: 16, 8>}]} {
    %c0 = arith.constant 0 : index
    %c0_0 = arith.constant 0 : index
    %0 = vector.load %arg1[%c0, %c0_0] : memref<16x8xbf16, #tpu.memory_space<vmem>>, vector<16x8xbf16>
    %c0_1 = arith.constant 0 : index
    %c0_2 = arith.constant 0 : index
    %1 = vector.load %arg2[%c0_1, %c0_2] : memref<8x256xbf16, #tpu.memory_space<vmem>>, vector<8x256xbf16>
    %cst = arith.constant dense<0.000000e+00> : vector<16x256xf32>
    %2 = tpu.matmul %0, %1, %cst {dimension_numbers = #tpu.dot_dimension_numbers<[1], [0], [0], [1], [0, 0, 1, 1], [], []>} : vector<16x8xbf16>, vector<8x256xbf16>, vector<16x256xf32> -> vector<16x256xf32>
    %3 = arith.truncf %2 : vector<16x256xf32> to vector<16x256xbf16>
    %cst_3 = arith.constant 0.000000e+00 : bf16
    %4 = vector.broadcast %cst_3 : bf16 to vector<16x256xbf16>
    %5 = arith.maximumf %3, %4 : vector<16x256xbf16>
    %c0_4 = arith.constant 0 : index
    %c0_5 = arith.constant 0 : index
    %6 = vector.load %arg3[%c0_4, %c0_5] : memref<256x128xbf16, #tpu.memory_space<vmem>>, vector<256x128xbf16>
    %cst_6 = arith.constant dense<0.000000e+00> : vector<16x128xf32>
    %7 = tpu.matmul %5, %6, %cst_6 {dimension_numbers = #tpu.dot_dimension_numbers<[1], [0], [0], [1], [0, 0, 1, 1], [], []>} : vector<16x256xbf16>, vector<256x128xbf16>, vector<16x128xf32> -> vector<16x128xf32>
    %8 = arith.truncf %7 : vector<16x128xf32> to vector<16x128xbf16>
    %c0_7 = arith.constant 0 : index
    %c0_8 = arith.constant 0 : index
    %9 = vector.load %arg4[%c0_7, %c0_8] : memref<1x128xf32, #tpu.memory_space<vmem>>, vector<1x128xf32>
    %10 = arith.truncf %9 : vector<1x128xf32> to vector<1x128xbf16>
    %11 = vector.broadcast %10 : vector<1x128xbf16> to vector<16x128xbf16>
    %12 = arith.addf %8, %11 : vector<16x128xbf16>
    %cst_9 = arith.constant 0.000000e+00 : bf16
    %13 = vector.broadcast %cst_9 : bf16 to vector<16x128xbf16>
    %14 = arith.maximumf %12, %13 : vector<16x128xbf16>
    %c0_10 = arith.constant 0 : index
    %c0_11 = arith.constant 0 : index
    %15 = vector.load %arg5[%c0_10, %c0_11] : memref<128x128xbf16, #tpu.memory_space<vmem>>, vector<128x128xbf16>
    %cst_12 = arith.constant dense<0.000000e+00> : vector<16x128xf32>
    %16 = tpu.matmul %14, %15, %cst_12 {dimension_numbers = #tpu.dot_dimension_numbers<[1], [0], [0], [1], [0, 0, 1, 1], [], []>} : vector<16x128xbf16>, vector<128x128xbf16>, vector<16x128xf32> -> vector<16x128xf32>
    %17 = arith.truncf %16 : vector<16x128xf32> to vector<16x128xbf16>
    %c0_13 = arith.constant 0 : index
    %c0_14 = arith.constant 0 : index
    %18 = vector.load %arg6[%c0_13, %c0_14] : memref<1x128xf32, #tpu.memory_space<vmem>>, vector<1x128xf32>
    %19 = arith.truncf %18 : vector<1x128xf32> to vector<1x128xbf16>
    %20 = vector.broadcast %19 : vector<1x128xbf16> to vector<16x128xbf16>
    %21 = arith.addf %17, %20 : vector<16x128xbf16>
    %cst_15 = arith.constant 0.000000e+00 : bf16
    %22 = vector.broadcast %cst_15 : bf16 to vector<16x128xbf16>
    %23 = arith.maximumf %21, %22 : vector<16x128xbf16>
    %c0_16 = arith.constant 0 : index
    %c0_17 = arith.constant 0 : index
    %24 = vector.load %arg7[%c0_16, %c0_17] : memref<128x128xbf16, #tpu.memory_space<vmem>>, vector<128x128xbf16>
    %cst_18 = arith.constant dense<0.000000e+00> : vector<16x128xf32>
    %25 = tpu.matmul %23, %24, %cst_18 {dimension_numbers = #tpu.dot_dimension_numbers<[1], [0], [0], [1], [0, 0, 1, 1], [], []>} : vector<16x128xbf16>, vector<128x128xbf16>, vector<16x128xf32> -> vector<16x128xf32>
    %c0_19 = arith.constant 0 : index
    %c0_20 = arith.constant 0 : index
    %26 = vector.load %arg8[%c0_19, %c0_20] : memref<1x128xf32, #tpu.memory_space<vmem>>, vector<1x128xf32>
    %27 = vector.broadcast %26 : vector<1x128xf32> to vector<16x128xf32>
    %28 = arith.addf %25, %27 : vector<16x128xf32>
    %29 = vector.extract_strided_slice %28 {offsets = [0, 0], sizes = [16, 8], strides = [1, 1]} : vector<16x128xf32> to vector<16x8xf32>
    %c0_21 = arith.constant 0 : index
    %c0_22 = arith.constant 0 : index
    %30 = vector.load %arg9[%c0_21, %c0_22] : memref<16x8xf32, #tpu.memory_space<vmem>>, vector<16x8xf32>
    tpu.vector_store %arg9[%c0_21, %c0_22], %29 {strides = array<i32>} : memref<16x8xf32, #tpu.memory_space<vmem>>, vector<16x8xf32>,
    return
  }
  func.func @transform_0(%arg0: i32) -> (i32, i32) {
    %c0_i32 = arith.constant 0 : i32
    %c0_i32_0 = arith.constant 0 : i32
    return %arg0, %c0_i32 : i32, i32
  }
  func.func @transform_1(%arg0: i32) -> (i32, i32) {
    %c0_i32 = arith.constant 0 : i32
    %c0_i32_0 = arith.constant 0 : i32
    %c0_i32_1 = arith.constant 0 : i32
    return %c0_i32, %c0_i32_0 : i32, i32
  }
  func.func @transform_2(%arg0: i32) -> (i32, i32) {
    %c0_i32 = arith.constant 0 : i32
    %c0_i32_0 = arith.constant 0 : i32
    %c0_i32_1 = arith.constant 0 : i32
    return %c0_i32, %c0_i32_0 : i32, i32
  }
  func.func @transform_3(%arg0: i32) -> (i32, i32) {
    %c0_i32 = arith.constant 0 : i32
    %c0_i32_0 = arith.constant 0 : i32
    %c0_i32_1 = arith.constant 0 : i32
    return %c0_i32, %c0_i32_0 : i32, i32
  }
  func.func @transform_4(%arg0: i32) -> (i32, i32) {
    %c0_i32 = arith.constant 0 : i32
    %c0_i32_0 = arith.constant 0 : i32
    %c0_i32_1 = arith.constant 0 : i32
    return %c0_i32, %c0_i32_0 : i32, i32
  }
  func.func @transform_5(%arg0: i32) -> (i32, i32) {
    %c0_i32 = arith.constant 0 : i32
    %c0_i32_0 = arith.constant 0 : i32
    %c0_i32_1 = arith.constant 0 : i32
    return %c0_i32, %c0_i32_0 : i32, i32
  }
  func.func @transform_6(%arg0: i32) -> (i32, i32) {
    %c0_i32 = arith.constant 0 : i32
    %c0_i32_0 = arith.constant 0 : i32
    %c0_i32_1 = arith.constant 0 : i32
    return %c0_i32, %c0_i32_0 : i32, i32
  }
  func.func @transform_7(%arg0: i32) -> (i32, i32) {
    %c0_i32 = arith.constant 0 : i32
    %c0_i32_0 = arith.constant 0 : i32
    %c0_i32_1 = arith.constant 0 : i32
    return %c0_i32, %c0_i32_0 : i32, i32
  }
  func.func @transform_8(%arg0: i32) -> (i32, i32) {
    %c0_i32 = arith.constant 0 : i32
    %c0_i32_0 = arith.constant 0 : i32
    return %arg0, %c0_i32 : i32, i32
  }
}

</mosaic_0001>

<llo_original>
// kernel: tpu_custom_call.1
$region0: #{tpu_custom_call.1}
  #allocation0 [shape = 'u32[]', space=smem, size = 0x4, offset = 0x4, fixed_abs, tag = 'smem constant byte address 0x4 - core index']
  #allocation1 [shape = 'u32[144,128]{1,0:T(1,128)}', space=vmem, size = 0x12000, scoped, tag = 'internal scratch']
  %s0 = inlined_call_operand.vmem [shape: bf16[32,8], index: 0, kind: input, shape index: {}]
  %s1 = inlined_call_operand.vmem [shape: bf16[8,256], index: 1, kind: input, shape index: {}]
  %s2 = inlined_call_operand.hbm [shape: bf16[256,128], index: 2, kind: input, shape index: {}]
  %s3 = inlined_call_operand.vmem [shape: f32[1,128], index: 3, kind: input, shape index: {}]
  %s4 = inlined_call_operand.hbm [shape: bf16[128,128], index: 4, kind: input, shape index: {}]
  %s5 = inlined_call_operand.vmem [shape: f32[1,128], index: 5, kind: input, shape index: {}]
  %s6 = inlined_call_operand.hbm [shape: bf16[128,128], index: 6, kind: input, shape index: {}]
  %s7 = inlined_call_operand.vmem [shape: f32[1,128], index: 7, kind: input, shape index: {}]
  %s8 = inlined_call_operand.vmem [shape: f32[32,8], index: 8, kind: output, shape index: {}]
  %s9 = sld [smem:[#allocation0]]
  $region77: #{tpu_custom_call.1} parent=0
    _
  %s11 = ssub.s32 1, %s9
  %s12 = scalar_select 0, %s11, %s9
  $region1: #{tpu_custom_call.1} parent=0
    #allocation2 [shape = 'u8[65536]{0}', space=vmem, size = 0x10000, scoped, tag = 'input window, operand 2, single buffered']
    #allocation3 [shape = 's32[2]{0}', space=sflag, size = 0x8, scoped, tag = 'scoped memory for tpu_custom_call.1']
    #allocation4 [shape = 'u8[32768]{0}', space=vmem, size = 0x8000, scoped, tag = 'input window, operand 4, single buffered']
    #allocation5 [shape = 's32[1]{0}', space=sflag, size = 0x4, scoped, tag = 'scoped memory for tpu_custom_call.1']
    #allocation6 [shape = 'u8[32768]{0}', space=vmem, size = 0x8000, scoped, tag = 'input window, operand 6, single buffered']
    %13 = vsyncpa [#allocation3], 0
    %14 = vsyncpa [#allocation5], 0
    loop: start=0, step=1, limit=4
    $region2: #{tpu_custom_call.1} parent=1 // loop_pre_header
      _
    $region3: #{tpu_custom_call.1} parent=1 // loop_header
      %s16 = sphi 0, %s20
      %p17 = scmp.ge.s32.totalorder %s16, 4
      %s26 = sphi 0, %s28
      %s29 = sphi 0, %s26
      %s30 = sphi 0, %s29
      %s46 = sphi 0, %s30
      %s50 = sphi 0, %s50
      %s52 = sphi 0, %s50
      %s53 = sphi 0, %s52
      %s67 = sphi 0, %s53
      %s71 = sphi 0, %s71
      %s73 = sphi 0, %s71
      %s74 = sphi 0, %s73
      %s88 = sphi 0, %s74
      %s92 = sphi 0, %s92
      %s94 = sphi 0, %s92
      %s95 = sphi 0, %s94
      %s109 = sphi 0, %s95
      %s113 = sphi 0, %s113
      %s115 = sphi 0, %s113
      %s116 = sphi 0, %s115
      %s130 = sphi 0, %s116
      %s134 = sphi 0, %s134
      %s136 = sphi 0, %s134
      %s137 = sphi 0, %s136
      %s151 = sphi 0, %s137
      %s155 = sphi 0, %s155
      %s157 = sphi 0, %s155
      %s158 = sphi 0, %s157
      %s172 = sphi 0, %s158
      %s176 = sphi 0, %s176
      %s178 = sphi 0, %s176
      %s179 = sphi 0, %s178
      %s193 = sphi 0, %s179
      %s199 = sphi 0, %s201
      %s202 = sphi 0, %s199
      %s203 = sphi 0, %s202
      %s219 = sphi 0, %s203
    $region4: #{tpu_custom_call.1} parent=1 // loop_header_branch
      %19 = sbr.rel (%p17) target = $region8
    $region5: #{tpu_custom_call.1} parent=1 // loop_body
      %s21 = ssub.s32 %s16, 1
      %s22 = ssub.s32 %s16, 2
      %s23 = sadd.s32 %s16, 1
      %s24 = ssub.s32 %s16, %s23
      %p25 = scmp.eq.s32.totalorder %s24, 0
      %s27 = sadd.s32 %s26, 1
      %s28 = scalar_select %p25, %s26, %s27
      %p31 = pneg %p25
      %p32 = scmp.eq.s32.totalorder %s16, 1
      %p33 = por %p31, %p32
      %p34 = scmp.ne.s32.totalorder %s26, %s29
      %p35 = scmp.eq.s32.totalorder %s16, 0
      %p36 = por %p34, %p35
      %p37 = scmp.ne.s32.totalorder %s26, %s29
      %p38 = scmp.eq.s32.totalorder %s21, 1
      %p39 = por %p37, %p38
      %p40 = scmp.ne.s32.totalorder %s29, %s30
      %p41 = scmp.eq.s32.totalorder %s21, 0
      %p42 = por %p40, %p41
      %p43 = scmp.ne.s32.totalorder %s29, %s30
      %p44 = scmp.eq.s32.totalorder %s22, 1
      %p45 = por %p43, %p44
      %p47 = scmp.ne.s32.totalorder %s30, %s46
      %p48 = scmp.eq.s32.totalorder %s22, 0
      %p49 = por %p47, %p48
      %s51 = sadd.s32 %s50, 1
      %p54 = scmp.eq.s32.totalorder %s16, 1
      %p55 = scmp.ne.s32.totalorder %s50, %s52
      %p56 = scmp.eq.s32.totalorder %s16, 0
      %p57 = por %p55, %p56
      %p58 = scmp.ne.s32.totalorder %s50, %s52
      %p59 = scmp.eq.s32.totalorder %s21, 1
      %p60 = por %p58, %p59
      %p61 = scmp.ne.s32.totalorder %s52, %s53
      %p62 = scmp.eq.s32.totalorder %s21, 0
      %p63 = por %p61, %p62
      %p64 = scmp.ne.s32.totalorder %s52, %s53
      %p65 = scmp.eq.s32.totalorder %s22, 1
      %p66 = por %p64, %p65
      %p68 = scmp.ne.s32.totalorder %s53, %s67
      %p69 = scmp.eq.s32.totalorder %s22, 0
      %p70 = por %p68, %p69
      %s72 = sadd.s32 %s71, 1
      %p75 = scmp.eq.s32.totalorder %s16, 1
      %p76 = scmp.ne.s32.totalorder %s71, %s73
      %p77 = scmp.eq.s32.totalorder %s16, 0
      %p78 = por %p76, %p77
      %p79 = scmp.ne.s32.totalorder %s71, %s73
      %p80 = scmp.eq.s32.totalorder %s21, 1
      %p81 = por %p79, %p80
      %p82 = scmp.ne.s32.totalorder %s73, %s74
      %p83 = scmp.eq.s32.totalorder %s21, 0
      %p84 = por %p82, %p83
      %p85 = scmp.ne.s32.totalorder %s73, %s74
      %p86 = scmp.eq.s32.totalorder %s22, 1
      %p87 = por %p85, %p86
      %p89 = scmp.ne.s32.totalorder %s74, %s88
      %p90 = scmp.eq.s32.totalorder %s22, 0
      %p91 = por %p89, %p90
      %s93 = sadd.s32 %s92, 1
      %p96 = scmp.eq.s32.totalorder %s16, 1
      %p97 = scmp.ne.s32.totalorder %s92, %s94
      %p98 = scmp.eq.s32.totalorder %s16, 0
      %p99 = por %p97, %p98
      %p100 = scmp.ne.s32.totalorder %s92, %s94
      %p101 = scmp.eq.s32.totalorder %s21, 1
      %p102 = por %p100, %p101
      %p103 = scmp.ne.s32.totalorder %s94, %s95
      %p104 = scmp.eq.s32.totalorder %s21, 0
      %p105 = por %p103, %p104
      %p106 = scmp.ne.s32.totalorder %s94, %s95
      %p107 = scmp.eq.s32.totalorder %s22, 1
      %p108 = por %p106, %p107
      %p110 = scmp.ne.s32.totalorder %s95, %s109
      %p111 = scmp.eq.s32.totalorder %s22, 0
      %p112 = por %p110, %p111
      %s114 = sadd.s32 %s113, 1
      %p117 = scmp.eq.s32.totalorder %s16, 1
      %p118 = scmp.ne.s32.totalorder %s113, %s115
      %p119 = scmp.eq.s32.totalorder %s16, 0
      %p120 = por %p118, %p119
      %p121 = scmp.ne.s32.totalorder %s113, %s115
      %p122 = scmp.eq.s32.totalorder %s21, 1
      %p123 = por %p121, %p122
      %p124 = scmp.ne.s32.totalorder %s115, %s116
      %p125 = scmp.eq.s32.totalorder %s21, 0
      %p126 = por %p124, %p125
      %p127 = scmp.ne.s32.totalorder %s115, %s116
      %p128 = scmp.eq.s32.totalorder %s22, 1
      %p129 = por %p127, %p128
      %p131 = scmp.ne.s32.totalorder %s116, %s130
      %p132 = scmp.eq.s32.totalorder %s22, 0
      %p133 = por %p131, %p132
      %s135 = sadd.s32 %s134, 1
      %p138 = scmp.eq.s32.totalorder %s16, 1
      %p139 = scmp.ne.s32.totalorder %s134, %s136
      %p140 = scmp.eq.s32.totalorder %s16, 0
      %p141 = por %p139, %p140
      %p142 = scmp.ne.s32.totalorder %s134, %s136
      %p143 = scmp.eq.s32.totalorder %s21, 1
      %p144 = por %p142, %p143
      %p145 = scmp.ne.s32.totalorder %s136, %s137
      %p146 = scmp.eq.s32.totalorder %s21, 0
      %p147 = por %p145, %p146
      %p148 = scmp.ne.s32.totalorder %s136, %s137
      %p149 = scmp.eq.s32.totalorder %s22, 1
      %p150 = por %p148, %p149
      %p152 = scmp.ne.s32.totalorder %s137, %s151
      %p153 = scmp.eq.s32.totalorder %s22, 0
      %p154 = por %p152, %p153
      %s156 = sadd.s32 %s155, 1
      %p159 = scmp.eq.s32.totalorder %s16, 1
      %p160 = scmp.ne.s32.totalorder %s155, %s157
      %p161 = scmp.eq.s32.totalorder %s16, 0
      %p162 = por %p160, %p161
      %p163 = scmp.ne.s32.totalorder %s155, %s157
      %p164 = scmp.eq.s32.totalorder %s21, 1
      %p165 = por %p163, %p164
      %p166 = scmp.ne.s32.totalorder %s157, %s158
      %p167 = scmp.eq.s32.totalorder %s21, 0
      %p168 = por %p166, %p167
      %p169 = scmp.ne.s32.totalorder %s157, %s158
      %p170 = scmp.eq.s32.totalorder %s22, 1
      %p171 = por %p169, %p170
      %p173 = scmp.ne.s32.totalorder %s158, %s172
      %p174 = scmp.eq.s32.totalorder %s22, 0
      %p175 = por %p173, %p174
      %s177 = sadd.s32 %s176, 1
      %p180 = scmp.eq.s32.totalorder %s16, 1
      %p181 = scmp.ne.s32.totalorder %s176, %s178
      %p182 = scmp.eq.s32.totalorder %s16, 0
      %p183 = por %p181, %p182
      %p184 = scmp.ne.s32.totalorder %s176, %s178
      %p185 = scmp.eq.s32.totalorder %s21, 1
      %p186 = por %p184, %p185
      %p187 = scmp.ne.s32.totalorder %s178, %s179
      %p188 = scmp.eq.s32.totalorder %s21, 0
      %p189 = por %p187, %p188
      %p190 = scmp.ne.s32.totalorder %s178, %s179
      %p191 = scmp.eq.s32.totalorder %s22, 1
      %p192 = por %p190, %p191
      %p194 = scmp.ne.s32.totalorder %s179, %s193
      %p195 = scmp.eq.s32.totalorder %s22, 0
      %p196 = por %p194, %p195
      %s197 = ssub.s32 %s16, %s23
      %p198 = scmp.eq.s32.totalorder %s197, 0
      %s200 = sadd.s32 %s199, 1
      %s201 = scalar_select %p198, %s199, %s200
      %p204 = pneg %p198
      %p205 = scmp.eq.s32.totalorder %s16, 1
      %p206 = por %p204, %p205
      %p207 = scmp.ne.s32.totalorder %s199, %s202
      %p208 = scmp.eq.s32.totalorder %s16, 0
      %p209 = por %p207, %p208
      %p210 = scmp.ne.s32.totalorder %s199, %s202
      %p211 = scmp.eq.s32.totalorder %s21, 1
      %p212 = por %p210, %p211
      %p213 = scmp.ne.s32.totalorder %s202, %s203
      %p214 = scmp.eq.s32.totalorder %s21, 0
      %p215 = por %p213, %p214
      %p216 = scmp.ne.s32.totalorder %s202, %s203
      %p217 = scmp.eq.s32.totalorder %s22, 1
      %p218 = por %p216, %p217
      %p220 = scmp.ne.s32.totalorder %s203, %s219
      %p221 = scmp.eq.s32.totalorder %s22, 0
      %p222 = por %p220, %p221
      %p223 = scmp.le.s32.totalorder 1, %s16
      %p224 = scmp.lt.s32.totalorder %s16, 3
      %p225 = pnand %p223, %p224
      %p226 = pneg %p225
      // Predicated region
      $region9: #{tpu_custom_call.1} parent=5 // pred_check
        _
      $region10: #{tpu_custom_call.1} parent=5 // pred_check_branch
        %228 = sbr.rel (%p225) target = $region12
      $region11: #{tpu_custom_call.1} parent=5 // pred_region
        %s229 = ssub.s32 %s16, 1
        // Predicated region
        $region13: #{tpu_custom_call.1} parent=11 // pred_check
          %p230 = pneg %p63
        $region14: #{tpu_custom_call.1} parent=11 // pred_check_branch
          %232 = sbr.rel (%p230) target = $region16
        $region15: #{tpu_custom_call.1} parent=11 // pred_region
          _
        $region16: #{tpu_custom_call.1} parent=11 // pred_fallthru
          _
        // Predicated region
        $region17: #{tpu_custom_call.1} parent=11 // pred_check
          %p233 = pneg %p84
        $region18: #{tpu_custom_call.1} parent=11 // pred_check_branch
          %235 = sbr.rel (%p233) target = $region20
        $region19: #{tpu_custom_call.1} parent=11 // pred_region
          %s237 = ssub.s32 2048, 2048
          %238 = vsyncadd [#allocation3], %s237
          %s239 = sshll.u32 [#allocation2], 4
          %s240 = int_to_ptr.vmem [resolvable:$true] %s239
          %245 = dma.hbm_to_vmem [thread:$0]  %s2, 2048, %s240, [#allocation3], 64, 64, 4
        $region20: #{tpu_custom_call.1} parent=11 // pred_fallthru
          _
        // Predicated region
        $region21: #{tpu_custom_call.1} parent=11 // pred_check
          %p246 = pneg %p105
        $region22: #{tpu_custom_call.1} parent=11 // pred_check_branch
          %248 = sbr.rel (%p246) target = $region24
        $region23: #{tpu_custom_call.1} parent=11 // pred_region
          _
        $region24: #{tpu_custom_call.1} parent=11 // pred_fallthru
          _
        // Predicated region
        $region25: #{tpu_custom_call.1} parent=11 // pred_check
          %p249 = pneg %p126
        $region26: #{tpu_custom_call.1} parent=11 // pred_check_branch
          %251 = sbr.rel (%p249) target = $region28
        $region27: #{tpu_custom_call.1} parent=11 // pred_region
          %s253 = ssub.s32 1024, 1024
          %254 = vsyncadd [#allocation5], %s253
          %s255 = sshll.u32 [#allocation4], 4
          %s256 = int_to_ptr.vmem [resolvable:$true] %s255
          %261 = dma.hbm_to_vmem [thread:$0]  %s4, 1024, %s256, [#allocation5], 64, 64, 4
        $region28: #{tpu_custom_call.1} parent=11 // pred_fallthru
          _
        // Predicated region
        $region29: #{tpu_custom_call.1} parent=11 // pred_check
          %p262 = pneg %p147
        $region30: #{tpu_custom_call.1} parent=11 // pred_check_branch
          %264 = sbr.rel (%p262) target = $region32
        $region31: #{tpu_custom_call.1} parent=11 // pred_region
          _
        $region32: #{tpu_custom_call.1} parent=11 // pred_fallthru
          _
        // Predicated region
        $region33: #{tpu_custom_call.1} parent=11 // pred_check
          %p265 = pneg %p168
        $region34: #{tpu_custom_call.1} parent=11 // pred_check_branch
          %267 = sbr.rel (%p265) target = $region36
        $region35: #{tpu_custom_call.1} parent=11 // pred_region
          %s269 = ssub.s32 1024, 1024
          %270 = vsyncadd [#allocation5], %s269
          %s271 = sshll.u32 [#allocation6], 4
          %s272 = int_to_ptr.vmem [resolvable:$true] %s271
          %277 = dma.hbm_to_vmem [thread:$0]  %s6, 1024, %s272, [#allocation5], 64, 64, 4
        $region36: #{tpu_custom_call.1} parent=11 // pred_fallthru
          _
        // Predicated region
        $region37: #{tpu_custom_call.1} parent=11 // pred_check
          %p278 = pneg %p189
        $region38: #{tpu_custom_call.1} parent=11 // pred_check_branch
          %280 = sbr.rel (%p278) target = $region40
        $region39: #{tpu_custom_call.1} parent=11 // pred_region
          _
        $region40: #{tpu_custom_call.1} parent=11 // pred_fallthru
          _
      $region12: #{tpu_custom_call.1} parent=5 // pred_fallthru
        _
      %p281 = scmp.lt.s32.totalorder %s16, 2
      // Predicated region
      $region41: #{tpu_custom_call.1} parent=5 // pred_check
        %p282 = pneg %p281
      $region42: #{tpu_custom_call.1} parent=5 // pred_check_branch
        %284 = sbr.rel (%p282) target = $region44
      $region43: #{tpu_custom_call.1} parent=5 // pred_region
        // Predicated region
        $region45: #{tpu_custom_call.1} parent=43 // pred_check
          %p285 = pneg %p36
        $region46: #{tpu_custom_call.1} parent=43 // pred_check_branch
          %287 = sbr.rel (%p285) target = $region48
        $region47: #{tpu_custom_call.1} parent=43 // pred_region
          %s288 = smul.u32 2, %s16
          %p289 = scmp.lt.s32.totalorder %s288, 3
          %s290 = scalar_select %p289, %s288, 3
          %s291 = smul.addr %s290, 4
          %s292 = scalar_lea.vmem %s0, %s291
          %s293 = smul.u32 2, %s16
        $region48: #{tpu_custom_call.1} parent=43 // pred_fallthru
          _
      $region44: #{tpu_custom_call.1} parent=5 // pred_fallthru
        _
      %p294 = scmp.le.s32.totalorder 1, %s16
      %p295 = scmp.lt.s32.totalorder %s16, 3
      %p296 = pnand %p294, %p295
      %p297 = pneg %p296
      // Predicated region
      $region49: #{tpu_custom_call.1} parent=5 // pred_check
        _
      $region50: #{tpu_custom_call.1} parent=5 // pred_check_branch
        %299 = sbr.rel (%p296) target = $region52
      $region51: #{tpu_custom_call.1} parent=5 // pred_region
        %s300 = ssub.s32 %s16, 1
        // Predicated region
        $region53: #{tpu_custom_call.1} parent=51 // pred_check
          %p301 = pneg %p84
        $region54: #{tpu_custom_call.1} parent=51 // pred_check_branch
          %303 = sbr.rel (%p301) target = $region56
        $region55: #{tpu_custom_call.1} parent=51 // pred_region
          %304 = dma.done [#allocation3], 2048
        $region56: #{tpu_custom_call.1} parent=51 // pred_fallthru
          _
        // Predicated region
        $region57: #{tpu_custom_call.1} parent=51 // pred_check
          %p305 = pneg %p126
        $region58: #{tpu_custom_call.1} parent=51 // pred_check_branch
          %307 = sbr.rel (%p305) target = $region60
        $region59: #{tpu_custom_call.1} parent=51 // pred_region
          %308 = dma.done [#allocation5], 1024
        $region60: #{tpu_custom_call.1} parent=51 // pred_fallthru
          _
        // Predicated region
        $region61: #{tpu_custom_call.1} parent=51 // pred_check
          %p309 = pneg %p168
        $region62: #{tpu_custom_call.1} parent=51 // pred_check_branch
          %311 = sbr.rel (%p309) target = $region64
        $region63: #{tpu_custom_call.1} parent=51 // pred_region
          %312 = dma.done [#allocation5], 1024
        $region64: #{tpu_custom_call.1} parent=51 // pred_fallthru
          _
        %s313 = smul.u32 2, %s21
        %p314 = scmp.lt.s32.totalorder %s313, 3
        %s315 = scalar_select %p314, %s313, 3
        %s316 = smul.addr %s315, 4
        %s317 = scalar_lea.vmem %s0, %s316
        %p318 = pneg %p42
        %p319 = pneg %p39
        %p320 = pneg %p63
        %p321 = pneg %p60
        %p322 = pneg %p84
        %p323 = pneg %p81
        %p324 = pneg %p105
        %p325 = pneg %p102
        %p326 = pneg %p126
        %p327 = pneg %p123
        %p328 = pneg %p147
        %p329 = pneg %p144
        %p330 = pneg %p168
        %p331 = pneg %p165
        %p332 = pneg %p189
        %p333 = pneg %p186
        %p334 = pneg %p215
        %p335 = pneg %p212
        %s336 = smul.u32 2, %s21
        %p337 = scmp.lt.s32.totalorder %s336, 3
        %s338 = scalar_select %p337, %s336, 3
        %s339 = smul.addr %s338, 8
        %s340 = scalar_lea.vmem %s8, %s339
        %s341 = smul.u32 2, %s21
        %p342 = scmp.lt.s32.totalorder %s341, 3
        %s343 = scalar_select %p342, %s341, 3
        %s344 = smul.addr %s343, 4
        %s345 = scalar_lea.vmem %s0, %s344
        %s346 = smul.u32 2, %s21
        %s347 = smul.u32 2, %s21
        %p348 = scmp.lt.s32.totalorder %s347, 3
        %s349 = scalar_select %p348, %s347, 3
        %s350 = smul.addr %s349, 8
        %s351 = scalar_lea.vmem %s8, %s350
        %s352 = smul.u32 2, %s21
        %v354 = vld [vmem:[%s345] sm:$0xf]
        %v355 = vld [vmem:[%s345 + $0x4] sm:$0xf]
        %v356 = vld [vmem:[%s1] sm:$0xff]
        %v359 = vunpack.c.l.b16 %v354
        %v360 = vunpack.c.l.b16 %v355
        %v361 = vpack.c.b16 %v360, %v359
        %v363 = vunpack.c.l.b16 %v356
        %v364 = vunpack.c.h.b16 %v356
        %v365 = vpack.c.b16 %v363, %v363
        %v366 = vpack.c.b16 %v364, %v364
        %vm367 = vcmask 64512
        %v369 = vsel %vm367, %v361, 0
        %vm371 = vcmask 1043456
        %v373 = vsel %vm371, %v365, 0
        %v376 = vsel %vm371, %v366, 0
        %378 = vmatprep.subr.bf16.mxu0 %v376
        %379 = vmatpush1.bf16.msra.mxu0 %v373
        %380 = vmatprep.subr.bf16.mxu0 0
        %381 = vmatpush1.bf16.msra.mxu0 0
        %382 = vmatprep.subr.bf16.mxu0 0
        %383 = vmatpush1.bf16.msra.mxu0 0
        %384 = vmatprep.subr.bf16.mxu0 0
        %385 = vmatpush1.bf16.msra.mxu0 0
        %386 = vmatprep.subr.bf16.mxu0 0
        %387 = vmatpush1.bf16.msra.mxu0 0
        %388 = vmatprep.subr.bf16.mxu0 0
        %389 = vmatpush1.bf16.msra.mxu0 0
        %390 = vmatprep.subr.bf16.mxu0 0
        %391 = vmatpush1.bf16.msra.mxu0 0
        %392 = vmatprep.subr.bf16.mxu0 0
        %393 = vmatpush1.bf16.msra.mxu0 0
        %394 = vmatprep.subr.bf16.mxu0 0
        %395 = vmatpush1.bf16.msra.mxu0 0
        %396 = vmatprep.subr.bf16.mxu0 0
        %397 = vmatpush1.bf16.msra.mxu0 0
        %398 = vmatprep.subr.bf16.mxu0 0
        %399 = vmatpush1.bf16.msra.mxu0 0
        %400 = vmatprep.subr.bf16.mxu0 0
        %401 = vmatpush1.bf16.msra.mxu0 0
        %402 = vmatprep.subr.bf16.mxu0 0
        %403 = vmatpush1.bf16.msra.mxu0 0
        %404 = vmatprep.subr.bf16.mxu0 0
        %405 = vmatpush1.bf16.msra.mxu0 0
        %406 = vmatprep.subr.bf16.mxu0 0
        %407 = vmatpush1.bf16.msra.mxu0 0
        %408 = vmatprep.subr.bf16.mxu0 0
        %409 = vmatpush1.bf16.msra.mxu0 0
        %410 = vmatprep.mubr.bf16.mxu0 0
        %411 = vmatmul.mubr.bf16.gmra.mrb[0].mxu0 %v369
        %v412 = vpop.f32.mrb[0].mxu0
        %v413 = vadd.f32 0.0, %v412
        %v414 = vpop.f32.mrb[0].mxu0
        %v415 = vadd.f32 0.0, %v414
        %v416 = vpop.f32.mrb[0].mxu0
        %v417 = vadd.f32 0.0, %v416
        %v418 = vpop.f32.mrb[0].mxu0
        %v419 = vadd.f32 0.0, %v418
        %420 = vdwg.mxu0
        %v421 = vpack.c.bf16 %v417, %v413
        %v422 = vpack.c.bf16 %v419, %v415
        %v423 = vmax.bf16 %v421, 0
        %v424 = vmax.bf16 %v422, 0
        %v425 = vld [vmem:[#allocation2] sm:$0xf]
        %v426 = vld [vmem:[#allocation2 + $0x4] sm:$0xf]
        %v427 = vld [vmem:[#allocation2 + $0x8] sm:$0xf]
        %v428 = vld [vmem:[#allocation2 + $0xc] sm:$0xf]
        %v429 = vld [vmem:[#allocation2 + $0x10] sm:$0xf]
        %v430 = vld [vmem:[#allocation2 + $0x14] sm:$0xf]
        %v431 = vld [vmem:[#allocation2 + $0x18] sm:$0xf]
        %v432 = vld [vmem:[#allocation2 + $0x1c] sm:$0xf]
        %v433 = vld [vmem:[#allocation2 + $0x20] sm:$0xf]
        %v434 = vld [vmem:[#allocation2 + $0x24] sm:$0xf]
        %v435 = vld [vmem:[#allocation2 + $0x28] sm:$0xf]
        %v436 = vld [vmem:[#allocation2 + $0x2c] sm:$0xf]
        %v437 = vld [vmem:[#allocation2 + $0x30] sm:$0xf]
        %v438 = vld [vmem:[#allocation2 + $0x34] sm:$0xf]
        %v439 = vld [vmem:[#allocation2 + $0x38] sm:$0xf]
        %v440 = vld [vmem:[#allocation2 + $0x3c] sm:$0xf]
        %v441 = vld [vmem:[#allocation2 + $0x40] sm:$0xf]
        %v442 = vld [vmem:[#allocation2 + $0x44] sm:$0xf]
        %v443 = vld [vmem:[#allocation2 + $0x48] sm:$0xf]
        %v444 = vld [vmem:[#allocation2 + $0x4c] sm:$0xf]
        %v445 = vld [vmem:[#allocation2 + $0x50] sm:$0xf]
        %v446 = vld [vmem:[#allocation2 + $0x54] sm:$0xf]
        %v447 = vld [vmem:[#allocation2 + $0x58] sm:$0xf]
        %v448 = vld [vmem:[#allocation2 + $0x5c] sm:$0xf]
        %v449 = vld [vmem:[#allocation2 + $0x60] sm:$0xf]
        %v450 = vld [vmem:[#allocation2 + $0x64] sm:$0xf]
        %v451 = vld [vmem:[#allocation2 + $0x68] sm:$0xf]
        %v452 = vld [vmem:[#allocation2 + $0x6c] sm:$0xf]
        %v453 = vld [vmem:[#allocation2 + $0x70] sm:$0xf]
        %v454 = vld [vmem:[#allocation2 + $0x74] sm:$0xf]
        %v455 = vld [vmem:[#allocation2 + $0x78] sm:$0xf]
        %v456 = vld [vmem:[#allocation2 + $0x7c] sm:$0xf]
        %v489 = vunpack.c.l.b16 %v425
        %v490 = vunpack.c.l.b16 %v426
        %v491 = vunpack.c.l.b16 %v427
        %v492 = vunpack.c.l.b16 %v428
        %v493 = vunpack.c.l.b16 %v429
        %v494 = vunpack.c.l.b16 %v430
        %v495 = vunpack.c.l.b16 %v431
        %v496 = vunpack.c.l.b16 %v432
        %v497 = vunpack.c.l.b16 %v433
        %v498 = vunpack.c.l.b16 %v434
        %v499 = vunpack.c.l.b16 %v435
        %v500 = vunpack.c.l.b16 %v436
        %v501 = vunpack.c.l.b16 %v437
        %v502 = vunpack.c.l.b16 %v438
        %v503 = vunpack.c.l.b16 %v439
        %v504 = vunpack.c.l.b16 %v440
        %v505 = vunpack.c.l.b16 %v441
        %v506 = vunpack.c.l.b16 %v442
        %v507 = vunpack.c.l.b16 %v443
        %v508 = vunpack.c.l.b16 %v444
        %v509 = vunpack.c.l.b16 %v445
        %v510 = vunpack.c.l.b16 %v446
        %v511 = vunpack.c.l.b16 %v447
        %v512 = vunpack.c.l.b16 %v448
        %v513 = vunpack.c.l.b16 %v449
        %v514 = vunpack.c.l.b16 %v450
        %v515 = vunpack.c.l.b16 %v451
        %v516 = vunpack.c.l.b16 %v452
        %v517 = vunpack.c.l.b16 %v453
        %v518 = vunpack.c.l.b16 %v454
        %v519 = vunpack.c.l.b16 %v455
        %v520 = vunpack.c.l.b16 %v456
        %v521 = vpack.c.b16 %v490, %v489
        %v522 = vpack.c.b16 %v492, %v491
        %v523 = vpack.c.b16 %v494, %v493
        %v524 = vpack.c.b16 %v496, %v495
        %v525 = vpack.c.b16 %v498, %v497
        %v526 = vpack.c.b16 %v500, %v499
        %v527 = vpack.c.b16 %v502, %v501
        %v528 = vpack.c.b16 %v504, %v503
        %v529 = vpack.c.b16 %v506, %v505
        %v530 = vpack.c.b16 %v508, %v507
        %v531 = vpack.c.b16 %v510, %v509
        %v532 = vpack.c.b16 %v512, %v511
        %v533 = vpack.c.b16 %v514, %v513
        %v534 = vpack.c.b16 %v516, %v515
        %v535 = vpack.c.b16 %v518, %v517
        %v536 = vpack.c.b16 %v520, %v519
        %553 = vmatprep.subr.bf16.mxu0 0
        %554 = vmatpush1.bf16.msra.mxu0 %v521
        %555 = vmatprep.subr.bf16.mxu0 0
        %556 = vmatpush1.bf16.msra.mxu0 %v522
        %557 = vmatprep.subr.bf16.mxu0 0
        %558 = vmatpush1.bf16.msra.mxu0 %v523
        %559 = vmatprep.subr.bf16.mxu0 0
        %560 = vmatpush1.bf16.msra.mxu0 %v524
        %561 = vmatprep.subr.bf16.mxu0 0
        %562 = vmatpush1.bf16.msra.mxu0 %v525
        %563 = vmatprep.subr.bf16.mxu0 0
        %564 = vmatpush1.bf16.msra.mxu0 %v526
        %565 = vmatprep.subr.bf16.mxu0 0
        %566 = vmatpush1.bf16.msra.mxu0 %v527
        %567 = vmatprep.subr.bf16.mxu0 0
        %568 = vmatpush1.bf16.msra.mxu0 %v528
        %569 = vmatprep.subr.bf16.mxu0 0
        %570 = vmatpush1.bf16.msra.mxu0 %v529
        %571 = vmatprep.subr.bf16.mxu0 0
        %572 = vmatpush1.bf16.msra.mxu0 %v530
        %573 = vmatprep.subr.bf16.mxu0 0
        %574 = vmatpush1.bf16.msra.mxu0 %v531
        %575 = vmatprep.subr.bf16.mxu0 0
        %576 = vmatpush1.bf16.msra.mxu0 %v532
        %577 = vmatprep.subr.bf16.mxu0 0
        %578 = vmatpush1.bf16.msra.mxu0 %v533
        %579 = vmatprep.subr.bf16.mxu0 0
        %580 = vmatpush1.bf16.msra.mxu0 %v534
        %581 = vmatprep.subr.bf16.mxu0 0
        %582 = vmatpush1.bf16.msra.mxu0 %v535
        %583 = vmatprep.subr.bf16.mxu0 0
        %584 = vmatpush1.bf16.msra.mxu0 %v536
        %585 = vmatprep.mubr.bf16.mxu0 %v424
        %586 = vmatmul.mubr.bf16.gmra.mrb[0].mxu0 %v423
        %v587 = vpop.f32.mrb[0].mxu0
        %v588 = vadd.f32 0.0, %v587
        %v589 = vpop.f32.mrb[0].mxu0
        %v590 = vpop.f32.mrb[0].mxu0
        %v591 = vadd.f32 0.0, %v590
        %v592 = vpop.f32.mrb[0].mxu0
        %593 = vdwg.mxu0
        %v594 = vpack.c.bf16 %v591, %v588
        %v595 = vld [vmem:[%s3] sm:$0x1]
        %v596 = vpack.c.bf16 %v595, %v595
        %v598 = vpack.i.b16 %v596, %v596
        %v600 = vlaneseq
        %v601 = vshrl.u32 %v600, 7
        %v602 = vsub.s32 0, %v601
        %v603 = vrot.slane %v598, %v602
        %v604 = vadd.bf16 %v594, %v603
        %v605 = vmax.bf16 %v604, 0
        %v606 = vld [vmem:[#allocation4] sm:$0xf]
        %v607 = vld [vmem:[#allocation4 + $0x4] sm:$0xf]
        %v608 = vld [vmem:[#allocation4 + $0x8] sm:$0xf]
        %v609 = vld [vmem:[#allocation4 + $0xc] sm:$0xf]
        %v610 = vld [vmem:[#allocation4 + $0x10] sm:$0xf]
        %v611 = vld [vmem:[#allocation4 + $0x14] sm:$0xf]
        %v612 = vld [vmem:[#allocation4 + $0x18] sm:$0xf]
        %v613 = vld [vmem:[#allocation4 + $0x1c] sm:$0xf]
        %v614 = vld [vmem:[#allocation4 + $0x20] sm:$0xf]
        %v615 = vld [vmem:[#allocation4 + $0x24] sm:$0xf]
        %v616 = vld [vmem:[#allocation4 + $0x28] sm:$0xf]
        %v617 = vld [vmem:[#allocation4 + $0x2c] sm:$0xf]
        %v618 = vld [vmem:[#allocation4 + $0x30] sm:$0xf]
        %v619 = vld [vmem:[#allocation4 + $0x34] sm:$0xf]
        %v620 = vld [vmem:[#allocation4 + $0x38] sm:$0xf]
        %v621 = vld [vmem:[#allocation4 + $0x3c] sm:$0xf]
        %v638 = vunpack.c.l.b16 %v606
        %v639 = vunpack.c.l.b16 %v607
        %v640 = vunpack.c.l.b16 %v608
        %v641 = vunpack.c.l.b16 %v609
        %v642 = vunpack.c.l.b16 %v610
        %v643 = vunpack.c.l.b16 %v611
        %v644 = vunpack.c.l.b16 %v612
        %v645 = vunpack.c.l.b16 %v613
        %v646 = vunpack.c.l.b16 %v614
        %v647 = vunpack.c.l.b16 %v615
        %v648 = vunpack.c.l.b16 %v616
        %v649 = vunpack.c.l.b16 %v617
        %v650 = vunpack.c.l.b16 %v618
        %v651 = vunpack.c.l.b16 %v619
        %v652 = vunpack.c.l.b16 %v620
        %v653 = vunpack.c.l.b16 %v621
        %v654 = vpack.c.b16 %v639, %v638
        %v655 = vpack.c.b16 %v641, %v640
        %v656 = vpack.c.b16 %v643, %v642
        %v657 = vpack.c.b16 %v645, %v644
        %v658 = vpack.c.b16 %v647, %v646
        %v659 = vpack.c.b16 %v649, %v648
        %v660 = vpack.c.b16 %v651, %v650
        %v661 = vpack.c.b16 %v653, %v652
        %670 = vmatprep.subr.bf16.mxu0 0
        %671 = vmatpush1.bf16.msra.mxu0 %v654
        %672 = vmatprep.subr.bf16.mxu0 0
        %673 = vmatpush1.bf16.msra.mxu0 %v655
        %674 = vmatprep.subr.bf16.mxu0 0
        %675 = vmatpush1.bf16.msra.mxu0 %v656
        %676 = vmatprep.subr.bf16.mxu0 0
        %677 = vmatpush1.bf16.msra.mxu0 %v657
        %678 = vmatprep.subr.bf16.mxu0 0
        %679 = vmatpush1.bf16.msra.mxu0 %v658
        %680 = vmatprep.subr.bf16.mxu0 0
        %681 = vmatpush1.bf16.msra.mxu0 %v659
        %682 = vmatprep.subr.bf16.mxu0 0
        %683 = vmatpush1.bf16.msra.mxu0 %v660
        %684 = vmatprep.subr.bf16.mxu0 0
        %685 = vmatpush1.bf16.msra.mxu0 %v661
        %686 = vmatprep.subr.bf16.mxu0 0
        %687 = vmatpush1.bf16.msra.mxu0 0
        %688 = vmatprep.subr.bf16.mxu0 0
        %689 = vmatpush1.bf16.msra.mxu0 0
        %690 = vmatprep.subr.bf16.mxu0 0
        %691 = vmatpush1.bf16.msra.mxu0 0
        %692 = vmatprep.subr.bf16.mxu0 0
        %693 = vmatpush1.bf16.msra.mxu0 0
        %694 = vmatprep.subr.bf16.mxu0 0
        %695 = vmatpush1.bf16.msra.mxu0 0
        %696 = vmatprep.subr.bf16.mxu0 0
        %697 = vmatpush1.bf16.msra.mxu0 0
        %698 = vmatprep.subr.bf16.mxu0 0
        %699 = vmatpush1.bf16.msra.mxu0 0
        %700 = vmatprep.subr.bf16.mxu0 0
        %701 = vmatpush1.bf16.msra.mxu0 0
        %702 = vmatprep.mubr.bf16.mxu0 0
        %703 = vmatmul.mubr.bf16.gmra.mrb[0].mxu0 %v605
        %v704 = vpop.f32.mrb[0].mxu0
        %v705 = vadd.f32 0.0, %v704
        %v706 = vpop.f32.mrb[0].mxu0
        %v707 = vpop.f32.mrb[0].mxu0
        %v708 = vadd.f32 0.0, %v707
        %v709 = vpop.f32.mrb[0].mxu0
        %710 = vdwg.mxu0
        %v711 = vpack.c.bf16 %v708, %v705
        %v712 = vld [vmem:[%s5] sm:$0x1]
        %v713 = vpack.c.bf16 %v712, %v712
        %v715 = vpack.i.b16 %v713, %v713
        %v717 = vlaneseq
        %v718 = vshrl.u32 %v717, 7
        %v719 = vsub.s32 0, %v718
        %v720 = vrot.slane %v715, %v719
        %v721 = vadd.bf16 %v711, %v720
        %v722 = vmax.bf16 %v721, 0
        %v723 = vld [vmem:[#allocation6] sm:$0xf]
        %v724 = vld [vmem:[#allocation6 + $0x4] sm:$0xf]
        %v725 = vld [vmem:[#allocation6 + $0x8] sm:$0xf]
        %v726 = vld [vmem:[#allocation6 + $0xc] sm:$0xf]
        %v727 = vld [vmem:[#allocation6 + $0x10] sm:$0xf]
        %v728 = vld [vmem:[#allocation6 + $0x14] sm:$0xf]
        %v729 = vld [vmem:[#allocation6 + $0x18] sm:$0xf]
        %v730 = vld [vmem:[#allocation6 + $0x1c] sm:$0xf]
        %v731 = vld [vmem:[#allocation6 + $0x20] sm:$0xf]
        %v732 = vld [vmem:[#allocation6 + $0x24] sm:$0xf]
        %v733 = vld [vmem:[#allocation6 + $0x28] sm:$0xf]
        %v734 = vld [vmem:[#allocation6 + $0x2c] sm:$0xf]
        %v735 = vld [vmem:[#allocation6 + $0x30] sm:$0xf]
        %v736 = vld [vmem:[#allocation6 + $0x34] sm:$0xf]
        %v737 = vld [vmem:[#allocation6 + $0x38] sm:$0xf]
        %v738 = vld [vmem:[#allocation6 + $0x3c] sm:$0xf]
        %v739 = vld [vmem:[%s7] sm:$0x1]
        %v741 = vlaneseq
        %v742 = vshrl.u32 %v741, 7
        %v743 = vsub.s32 0, %v742
        %v744 = vrot.slane %v739, %v743
        %v762 = vunpack.c.l.b16 %v723
        %v763 = vunpack.c.l.b16 %v724
        %v764 = vunpack.c.l.b16 %v725
        %v765 = vunpack.c.l.b16 %v726
        %v766 = vunpack.c.l.b16 %v727
        %v767 = vunpack.c.l.b16 %v728
        %v768 = vunpack.c.l.b16 %v729
        %v769 = vunpack.c.l.b16 %v730
        %v770 = vunpack.c.l.b16 %v731
        %v771 = vunpack.c.l.b16 %v732
        %v772 = vunpack.c.l.b16 %v733
        %v773 = vunpack.c.l.b16 %v734
        %v774 = vunpack.c.l.b16 %v735
        %v775 = vunpack.c.l.b16 %v736
        %v776 = vunpack.c.l.b16 %v737
        %v777 = vunpack.c.l.b16 %v738
        %v778 = vpack.c.b16 %v763, %v762
        %v779 = vpack.c.b16 %v765, %v764
        %v780 = vpack.c.b16 %v767, %v766
        %v781 = vpack.c.b16 %v769, %v768
        %v782 = vpack.c.b16 %v771, %v770
        %v783 = vpack.c.b16 %v773, %v772
        %v784 = vpack.c.b16 %v775, %v774
        %v785 = vpack.c.b16 %v777, %v776
        %794 = vmatprep.subr.bf16.mxu0 0
        %795 = vmatpush1.bf16.msra.mxu0 %v778
        %796 = vmatprep.subr.bf16.mxu0 0
        %797 = vmatpush1.bf16.msra.mxu0 %v779
        %798 = vmatprep.subr.bf16.mxu0 0
        %799 = vmatpush1.bf16.msra.mxu0 %v780
        %800 = vmatprep.subr.bf16.mxu0 0
        %801 = vmatpush1.bf16.msra.mxu0 %v781
        %802 = vmatprep.subr.bf16.mxu0 0
        %803 = vmatpush1.bf16.msra.mxu0 %v782
        %804 = vmatprep.subr.bf16.mxu0 0
        %805 = vmatpush1.bf16.msra.mxu0 %v783
        %806 = vmatprep.subr.bf16.mxu0 0
        %807 = vmatpush1.bf16.msra.mxu0 %v784
        %808 = vmatprep.subr.bf16.mxu0 0
        %809 = vmatpush1.bf16.msra.mxu0 %v785
        %810 = vmatprep.subr.bf16.mxu0 0
        %811 = vmatpush1.bf16.msra.mxu0 0
        %812 = vmatprep.subr.bf16.mxu0 0
        %813 = vmatpush1.bf16.msra.mxu0 0
        %814 = vmatprep.subr.bf16.mxu0 0
        %815 = vmatpush1.bf16.msra.mxu0 0
        %816 = vmatprep.subr.bf16.mxu0 0
        %817 = vmatpush1.bf16.msra.mxu0 0
        %818 = vmatprep.subr.bf16.mxu0 0
        %819 = vmatpush1.bf16.msra.mxu0 0
        %820 = vmatprep.subr.bf16.mxu0 0
        %821 = vmatpush1.bf16.msra.mxu0 0
        %822 = vmatprep.subr.bf16.mxu0 0
        %823 = vmatpush1.bf16.msra.mxu0 0
        %824 = vmatprep.subr.bf16.mxu0 0
        %825 = vmatpush1.bf16.msra.mxu0 0
        %826 = vmatprep.mubr.bf16.mxu0 0
        %827 = vmatmul.mubr.bf16.gmra.mrb[0].mxu0 %v722
        %v828 = vpop.f32.mrb[0].mxu0
        %v829 = vadd.f32 %v744, %v828
        %v830 = vpop.f32.mrb[0].mxu0
        %v831 = vpop.f32.mrb[0].mxu0
        %v832 = vadd.f32 %v744, %v831
        %v833 = vpop.f32.mrb[0].mxu0
        %834 = vdwg.mxu0
        %835 = vst.msk [vmem:[%s351] sm:$0xff] %vm367, %v829
        %836 = vst.msk [vmem:[%s351 + $0x8] sm:$0xff] %vm367, %v832
        %s837 = smul.u32 2, %s21
        %p838 = scmp.lt.s32.totalorder %s837, 3
        %s839 = scalar_select %p838, %s837, 3
        %s840 = smul.addr %s839, 8
        %s841 = scalar_lea.vmem %s8, %s840
        // Predicated region
        $region65: #{tpu_custom_call.1} parent=51 // pred_check
          %p842 = pneg %p212
        $region66: #{tpu_custom_call.1} parent=51 // pred_check_branch
          %844 = sbr.rel (%p842) target = $region68
        $region67: #{tpu_custom_call.1} parent=51 // pred_region
          %s845 = smul.u32 2, %s21
        $region68: #{tpu_custom_call.1} parent=51 // pred_fallthru
          _
      $region52: #{tpu_custom_call.1} parent=5 // pred_fallthru
        _
      %p846 = scmp.le.s32.totalorder 2, %s16
      // Predicated region
      $region69: #{tpu_custom_call.1} parent=5 // pred_check
        %p847 = pneg %p846
      $region70: #{tpu_custom_call.1} parent=5 // pred_check_branch
        %849 = sbr.rel (%p847) target = $region72
      $region71: #{tpu_custom_call.1} parent=5 // pred_region
        %s850 = ssub.s32 %s16, 2
        // Predicated region
        $region73: #{tpu_custom_call.1} parent=71 // pred_check
          %p851 = pneg %p218
        $region74: #{tpu_custom_call.1} parent=71 // pred_check_branch
          %853 = sbr.rel (%p851) target = $region76
        $region75: #{tpu_custom_call.1} parent=71 // pred_region
          %s854 = smul.u32 2, %s22
          %p855 = scmp.lt.s32.totalorder %s854, 3
          %s856 = scalar_select %p855, %s854, 3
          %s857 = smul.addr %s856, 8
          %s858 = scalar_lea.vmem %s8, %s857
        $region76: #{tpu_custom_call.1} parent=71 // pred_fallthru
          _
      $region72: #{tpu_custom_call.1} parent=5 // pred_fallthru
        _
    $region6: #{tpu_custom_call.1} parent=1 // loop_footer
      %s20 = sadd.s32 1, %s16
    $region7: #{tpu_custom_call.1} parent=1 // loop_footer_branch
      %15 = sbr.rel target = $region3
    $region8: #{tpu_custom_call.1} parent=1 // loop_exit
      _
    %859 = vsyncpa [#allocation3], 1
    %s860 = scalar_lea.sflag [#allocation3], 1
    %861 = vsyncpa %s860, 1
    %862 = vsyncpa [#allocation5], 1

</llo_original>
